<compile_context>
chip_gen: v7x
topology: tpu7x:2x2x1
jax: 0.10.0
libtpu: 0.0.40
codegen_flags: <defaults>
</compile_context>

<pallas_src>
import functools

import jax
import jax.numpy as jnp
import numpy as np
from jax import lax
from jax.experimental import pallas as pl
from jax.experimental.pallas import tpu as pltpu


def _downsample_matmul_kernel(x_ref, w_ref, b_ref, o_ref):
    """One (Cout, 9C) @ (9C, TM) MXU matmul per grid step, dense (Cout, TM) store.

    x_ref: (1, 9*C, TM)   tap-major im2col block (compute dtype).
    w_ref: (Cout, 9*C)    folded weight (compute dtype).
    b_ref: (Cout, 1)      bias (f32).
    o_ref: (1, Cout, TM)  output block (x dtype).
    """
    acc = jnp.dot(w_ref[...], x_ref[0], preferred_element_type=jnp.float32)
    o_ref[0] = (acc + b_ref[...]).astype(o_ref.dtype)


def _pick_spatial_tile(m, cap=2048):
    """Largest multiple-of-128 divisor of m that is <= min(m // 2, cap); else m.

    Preferring m // tm >= 2 keeps at least two independent grid steps per image so both
    v7x TensorCores get work even at batch 1.
    """
    if m % 128 != 0:
        return m
    best = m
    tm = 128
    limit = min(m // 2, cap)
    while tm <= limit:
        if m % tm == 0:
            best = tm
        tm += 128
    return best


@functools.partial(jax.jit, static_argnames=("tm", "compute_dtype"))
def downsample_pallas(x, weight, bias, *, tm=None, compute_dtype=jnp.bfloat16):
    """x: (N, C, H, W); weight: (Cout, C, 3, 3) PyTorch layout; bias: (Cout,).

    compute_dtype=jnp.bfloat16 (default) streams/multiplies in bf16 with f32 accumulation
    (full-rate MXU on v5e/v6e/v7x, half the HBM bytes); jnp.float32 is the debug path.
    """
    N, C, H, W = x.shape
    Cout = weight.shape[0]
    Ho = (H - 1) // 2 + 1          # = ((H + 2) - 3) // 2 + 1
    Wo = (W - 1) // 2 + 1
    M = Ho * Wo
    cdt = jnp.dtype(compute_dtype)

    if tm is None:
        tm = _pick_spatial_tile(M)
    assert M % tm == 0 and (tm % 128 == 0 or tm == M), (M, tm)
    nb = M // tm

    # Reflection pad (+1 each side) and tap-major im2col: channel index = k*C + c with
    # tap k = 3*kh + kw.  One fused XLA pass, written directly in the compute dtype, so
    # every in-kernel access is contiguous and lane-aligned (no halo, no dw=1 lane shift).
    xp = jnp.pad(x, ((0, 0), (0, 0), (1, 1), (1, 1)), mode="reflect")
    slabs = [xp[:, :, kh:kh + 2 * Ho:2, kw:kw + 2 * Wo:2]
             for kh in range(3) for kw in range(3)]
    x9 = jnp.concatenate(slabs, axis=1).reshape(N, 9 * C, M).astype(cdt)

    # (Cout, C, 3, 3) -> (Cout, 9*C); column index (3*kh + kw)*C + c matches x9.
    w2 = jnp.transpose(weight, (0, 2, 3, 1)).reshape(Cout, 9 * C).astype(cdt)
    b2 = bias.reshape(Cout, 1).astype(jnp.float32)

    isz = cdt.itemsize
    osz = jnp.dtype(x.dtype).itemsize
    cost = pl.CostEstimate(
        flops=2 * N * M * Cout * 9 * C,
        transcendentals=0,
        bytes_accessed=(x9.size * isz + w2.size * isz + b2.size * 4
                        + N * Cout * M * osz),
    )

    # Scoped-VMEM limit sized to the actual double-buffered block footprint (+ headroom),
    # clamped to v7x's 64 MiB physical ceiling.
    in_blk = 9 * C * tm * isz
    out_blk = Cout * tm * osz
    w_bytes = Cout * 9 * C * isz
    vmem_need = 2 * (in_blk + w_bytes + Cout * 4 + out_blk) + (4 << 20)
    vmem_limit = int(min(max(vmem_need, 32 << 20), 64 << 20))

    out_flat = pl.pallas_call(
        _downsample_matmul_kernel,
        out_shape=jax.ShapeDtypeStruct((N, Cout, M), x.dtype),
        grid_spec=pltpu.PrefetchScalarGridSpec(
            num_scalar_prefetch=0,
            grid=(N, nb),
            in_specs=[
                pl.BlockSpec((1, 9 * C, tm), lambda n, j: (n, 0, j)),
                pl.BlockSpec((Cout, 9 * C), lambda n, j: (0, 0)),
                pl.BlockSpec((Cout, 1), lambda n, j: (0, 0)),
            ],
            out_specs=pl.BlockSpec((1, Cout, tm), lambda n, j: (n, 0, j)),
        ),
        compiler_params=pltpu.CompilerParams(
            dimension_semantics=("parallel", "parallel"),
            vmem_limit_bytes=vmem_limit,
        ),
        cost_estimate=cost,
    )(x9, w2, b2)

    # Free (contiguous) reshape back to the consumer's NCHW layout.
    return out_flat.reshape(N, Cout, Ho, Wo)


def _reference(x, weight, bias):
    xp = jnp.pad(x, ((0, 0), (0, 0), (1, 1), (1, 1)), mode="reflect")
    y = lax.conv_general_dilated(
        xp, weight, window_strides=(2, 2), padding="VALID",
        dimension_numbers=("NCHW", "OIHW", "NCHW"))
    return y + bias.reshape(1, -1, 1, 1)


if __name__ == "__main__":
    key = jax.random.PRNGKey(0)
    k_x, k_w, k_b, k_x2, k_w2, k_b2 = jax.random.split(key, 6)

    # Deterministic synthetic parameters matching nn.Conv2d(C, C, 3) shapes.
    N, C, H, W = 2, 4, 16, 16
    x = jax.random.normal(k_x, (N, C, H, W), dtype=jnp.float32)
    fan_in = C * 3 * 3
    bound = 1.0 / np.sqrt(fan_in)
    weight = jax.random.uniform(k_w, (C, C, 3, 3), minval=-bound, maxval=bound,
                                dtype=jnp.float32)
    bias = jax.random.uniform(k_b, (C,), minval=-bound, maxval=bound,
                              dtype=jnp.float32)

    ref = jax.block_until_ready(_reference(x, weight, bias))

    # f32 debug path: matches the PyTorch module numerics tightly.
    out_f32 = jax.block_until_ready(
        downsample_pallas(x, weight, bias, compute_dtype=jnp.float32))
    assert out_f32.shape == (N, C, 8, 8), out_f32.shape
    np.testing.assert_allclose(np.asarray(out_f32), np.asarray(ref),
                               rtol=1e-5, atol=1e-5)

    # Default bf16 streaming/MXU path (f32 accumulation): looser tolerance.
    out = jax.block_until_ready(downsample_pallas(x, weight, bias))
    np.testing.assert_allclose(np.asarray(out), np.asarray(ref),
                               rtol=5e-2, atol=5e-2)

    # Odd spatial size / different channel count, f32 path (same code path, no halo
    # special-casing needed).
    N2, C2, H2, W2 = 1, 3, 15, 13
    x2 = jax.random.normal(k_x2, (N2, C2, H2, W2), dtype=jnp.float32)
    w2 = 0.1 * jax.random.normal(k_w2, (C2, C2, 3, 3), dtype=jnp.float32)
    b2 = 0.1 * jax.random.normal(k_b2, (C2,), dtype=jnp.float32)
    ref2 = jax.block_until_ready(_reference(x2, w2, b2))
    out2 = jax.block_until_ready(
        downsample_pallas(x2, w2, b2, compute_dtype=jnp.float32))
    assert out2.shape == ref2.shape, (out2.shape, ref2.shape)
    np.testing.assert_allclose(np.asarray(out2), np.asarray(ref2),
                               rtol=1e-5, atol=1e-5)

    print("KERNEL_OK")
</pallas_src>

<mosaic_0001>
module attributes {stable_mosaic.version = 11 : i64} {
  func.func @_downsample_matmul_kernel(%arg0: i32, %arg1: i32, %arg2: memref<1x36x64xf32, #tpu.memory_space<vmem>>, %arg3: memref<4x36xf32, #tpu.memory_space<vmem>>, %arg4: memref<4x1xf32, #tpu.memory_space<vmem>>, %arg5: memref<1x4x64xf32, #tpu.memory_space<vmem>>) attributes {dimension_semantics = [#tpu.dimension_semantics<parallel>, #tpu.dimension_semantics<parallel>], iteration_bounds = array<i64: 2, 1>, scalar_prefetch = 0 : i64, scratch_operands = 0 : i64, tpu.core_type = #tpu.core_type<tc>, window_params = [{transform_indices = @transform_0, window_bounds = array<i64: 1, 36, 64>}, {pipeline_mode = #tpu.pipeline_mode<synchronous>, transform_indices = @transform_1, window_bounds = array<i64: 4, 36>}, {pipeline_mode = #tpu.pipeline_mode<synchronous>, transform_indices = @transform_2, window_bounds = array<i64: 4, 1>}, {transform_indices = @transform_3, window_bounds = array<i64: 1, 4, 64>}]} {
    %c0 = arith.constant 0 : index
    %c0_0 = arith.constant 0 : index
    %0 = vector.load %arg3[%c0, %c0_0] : memref<4x36xf32, #tpu.memory_space<vmem>>, vector<4x36xf32>
    %c0_1 = arith.constant 0 : index
    %c0_2 = arith.constant 0 : index
    %c0_3 = arith.constant 0 : index
    %1 = vector.load %arg2[%c0_1, %c0_2, %c0_3] : memref<1x36x64xf32, #tpu.memory_space<vmem>>, vector<1x36x64xf32>
    %2 = vector.shape_cast %1 : vector<1x36x64xf32> to vector<36x64xf32>
    %cst = arith.constant dense<0.000000e+00> : vector<4x64xf32>
    %3 = tpu.matmul %0, %2, %cst {dimension_numbers = #tpu.dot_dimension_numbers<[1], [0], [0], [1], [0, 0, 1, 1], [], []>} : vector<4x36xf32>, vector<36x64xf32>, vector<4x64xf32> -> vector<4x64xf32>
    %c0_4 = arith.constant 0 : index
    %c0_5 = arith.constant 0 : index
    %4 = vector.load %arg4[%c0_4, %c0_5] : memref<4x1xf32, #tpu.memory_space<vmem>>, vector<4x1xf32>
    %5 = vector.broadcast %4 : vector<4x1xf32> to vector<4x64xf32>
    %6 = arith.addf %3, %5 : vector<4x64xf32>
    %c0_6 = arith.constant 0 : index
    %c0_7 = arith.constant 0 : index
    %c0_8 = arith.constant 0 : index
    %7 = vector.load %arg5[%c0_6, %c0_7, %c0_8] : memref<1x4x64xf32, #tpu.memory_space<vmem>>, vector<1x4x64xf32>
    %8 = vector.shape_cast %7 : vector<1x4x64xf32> to vector<4x64xf32>
    %9 = vector.shape_cast %6 : vector<4x64xf32> to vector<1x4x64xf32>
    tpu.vector_store %arg5[%c0_6, %c0_7, %c0_8], %9 {strides = array<i32>} : memref<1x4x64xf32, #tpu.memory_space<vmem>>, vector<1x4x64xf32>,
    return
  }
  func.func @transform_0(%arg0: i32, %arg1: i32) -> (i32, i32, i32) {
    %c0_i32 = arith.constant 0 : i32
    %c0_i32_0 = arith.constant 0 : i32
    return %arg0, %c0_i32, %arg1 : i32, i32, i32
  }
  func.func @transform_1(%arg0: i32, %arg1: i32) -> (i32, i32) {
    %c0_i32 = arith.constant 0 : i32
    %c0_i32_0 = arith.constant 0 : i32
    %c0_i32_1 = arith.constant 0 : i32
    return %c0_i32, %c0_i32_0 : i32, i32
  }
  func.func @transform_2(%arg0: i32, %arg1: i32) -> (i32, i32) {
    %c0_i32 = arith.constant 0 : i32
    %c0_i32_0 = arith.constant 0 : i32
    %c0_i32_1 = arith.constant 0 : i32
    return %c0_i32, %c0_i32_0 : i32, i32
  }
  func.func @transform_3(%arg0: i32, %arg1: i32) -> (i32, i32, i32) {
    %c0_i32 = arith.constant 0 : i32
    %c0_i32_0 = arith.constant 0 : i32
    return %arg0, %c0_i32, %arg1 : i32, i32, i32
  }
}

</mosaic_0001>

<llo_original>
// kernel: downsample_pallas.1
$region0: #{downsample_pallas.1}
  #allocation0 [shape = 'u32[]', space=smem, size = 0x4, offset = 0x4, fixed_abs, tag = 'smem constant byte address 0x4 - core index']
  #allocation1 [shape = 'u32[144,128]{1,0:T(1,128)}', space=vmem, size = 0x12000, scoped, tag = 'internal scratch']
  %s0 = inlined_call_operand.vmem [shape: f32[2,36,64], index: 0, kind: input, shape index: {}]
  %s1 = inlined_call_operand.vmem [shape: f32[4,36], index: 1, kind: input, shape index: {}]
  %s2 = inlined_call_operand.vmem [shape: f32[4,1], index: 2, kind: input, shape index: {}]
  %s3 = inlined_call_operand.vmem [shape: f32[2,4,64], index: 3, kind: output, shape index: {}]
  %s4 = sld [smem:[#allocation0]]
  $region45: #{downsample_pallas.1} parent=0
    _
  %s6 = ssub.s32 1, %s4
  %s7 = scalar_select 0, %s6, %s4
  loop: start=0, step=1, limit=4
  $region2: #{downsample_pallas.1} parent=0 // loop_pre_header
    _
  $region3: #{downsample_pallas.1} parent=0 // loop_header
    %s9 = sphi 0, %s13
    %p10 = scmp.ge.s32.totalorder %s9, 4
    %s16 = sphi 0, %s28
    %s17 = sphi 0, %s24
    %s18 = sphi 0, %s16
    %s19 = sphi 0, %s17
    %s20 = sphi 0, %s18
    %s21 = sphi 0, %s19
    %s33 = sphi 0, %s35
    %s36 = sphi 0, %s33
    %s37 = sphi 0, %s36
    %s53 = sphi 0, %s37
    %s57 = sphi 0, %s57
    %s59 = sphi 0, %s57
    %s60 = sphi 0, %s59
    %s74 = sphi 0, %s60
    %s78 = sphi 0, %s78
    %s80 = sphi 0, %s78
    %s81 = sphi 0, %s80
    %s95 = sphi 0, %s81
    %s103 = sphi 0, %s105
    %s106 = sphi 0, %s103
    %s107 = sphi 0, %s106
    %s123 = sphi 0, %s107
  $region4: #{downsample_pallas.1} parent=0 // loop_header_branch
    %12 = sbr.rel (%p10) target = $region8
  $region5: #{downsample_pallas.1} parent=0 // loop_body
    %s14 = ssub.s32 %s9, 1
    %s15 = ssub.s32 %s9, 2
    %s22 = sadd.s32 1, %s17
    %p23 = scmp.ge.s32.totalorder %s22, 1
    %s24 = scalar_select %p23, 0, %s22
    %s25 = sadd.s32 1, %s16
    %s26 = scalar_select %p23, %s25, %s16
    %p27 = scmp.ge.s32.totalorder %s26, 2
    %s28 = scalar_select %p27, 0, %s26
    %s29 = ssub.s32 %s16, %s28
    %s30 = ssub.s32 %s17, %s24
    %s31 = sor.u32 %s29, %s30
    %p32 = scmp.eq.s32.totalorder %s31, 0
    %s34 = sadd.s32 %s33, 1
    %s35 = scalar_select %p32, %s33, %s34
    %p38 = pneg %p32
    %p39 = scmp.eq.s32.totalorder %s9, 1
    %p40 = por %p38, %p39
    %p41 = scmp.ne.s32.totalorder %s33, %s36
    %p42 = scmp.eq.s32.totalorder %s9, 0
    %p43 = por %p41, %p42
    %p44 = scmp.ne.s32.totalorder %s33, %s36
    %p45 = scmp.eq.s32.totalorder %s14, 1
    %p46 = por %p44, %p45
    %p47 = scmp.ne.s32.totalorder %s36, %s37
    %p48 = scmp.eq.s32.totalorder %s14, 0
    %p49 = por %p47, %p48
    %p50 = scmp.ne.s32.totalorder %s36, %s37
    %p51 = scmp.eq.s32.totalorder %s15, 1
    %p52 = por %p50, %p51
    %p54 = scmp.ne.s32.totalorder %s37, %s53
    %p55 = scmp.eq.s32.totalorder %s15, 0
    %p56 = por %p54, %p55
    %s58 = sadd.s32 %s57, 1
    %p61 = scmp.eq.s32.totalorder %s9, 1
    %p62 = scmp.ne.s32.totalorder %s57, %s59
    %p63 = scmp.eq.s32.totalorder %s9, 0
    %p64 = por %p62, %p63
    %p65 = scmp.ne.s32.totalorder %s57, %s59
    %p66 = scmp.eq.s32.totalorder %s14, 1
    %p67 = por %p65, %p66
    %p68 = scmp.ne.s32.totalorder %s59, %s60
    %p69 = scmp.eq.s32.totalorder %s14, 0
    %p70 = por %p68, %p69
    %p71 = scmp.ne.s32.totalorder %s59, %s60
    %p72 = scmp.eq.s32.totalorder %s15, 1
    %p73 = por %p71, %p72
    %p75 = scmp.ne.s32.totalorder %s60, %s74
    %p76 = scmp.eq.s32.totalorder %s15, 0
    %p77 = por %p75, %p76
    %s79 = sadd.s32 %s78, 1
    %p82 = scmp.eq.s32.totalorder %s9, 1
    %p83 = scmp.ne.s32.totalorder %s78, %s80
    %p84 = scmp.eq.s32.totalorder %s9, 0
    %p85 = por %p83, %p84
    %p86 = scmp.ne.s32.totalorder %s78, %s80
    %p87 = scmp.eq.s32.totalorder %s14, 1
    %p88 = por %p86, %p87
    %p89 = scmp.ne.s32.totalorder %s80, %s81
    %p90 = scmp.eq.s32.totalorder %s14, 0
    %p91 = por %p89, %p90
    %p92 = scmp.ne.s32.totalorder %s80, %s81
    %p93 = scmp.eq.s32.totalorder %s15, 1
    %p94 = por %p92, %p93
    %p96 = scmp.ne.s32.totalorder %s81, %s95
    %p97 = scmp.eq.s32.totalorder %s15, 0
    %p98 = por %p96, %p97
    %s99 = ssub.s32 %s16, %s28
    %s100 = ssub.s32 %s17, %s24
    %s101 = sor.u32 %s99, %s100
    %p102 = scmp.eq.s32.totalorder %s101, 0
    %s104 = sadd.s32 %s103, 1
    %s105 = scalar_select %p102, %s103, %s104
    %p108 = pneg %p102
    %p109 = scmp.eq.s32.totalorder %s9, 1
    %p110 = por %p108, %p109
    %p111 = scmp.ne.s32.totalorder %s103, %s106
    %p112 = scmp.eq.s32.totalorder %s9, 0
    %p113 = por %p111, %p112
    %p114 = scmp.ne.s32.totalorder %s103, %s106
    %p115 = scmp.eq.s32.totalorder %s14, 1
    %p116 = por %p114, %p115
    %p117 = scmp.ne.s32.totalorder %s106, %s107
    %p118 = scmp.eq.s32.totalorder %s14, 0
    %p119 = por %p117, %p118
    %p120 = scmp.ne.s32.totalorder %s106, %s107
    %p121 = scmp.eq.s32.totalorder %s15, 1
    %p122 = por %p120, %p121
    %p124 = scmp.ne.s32.totalorder %s107, %s123
    %p125 = scmp.eq.s32.totalorder %s15, 0
    %p126 = por %p124, %p125
    %p127 = scmp.le.s32.totalorder 1, %s9
    %p128 = scmp.lt.s32.totalorder %s9, 3
    %p129 = pnand %p127, %p128
    %p130 = pneg %p129
    // Predicated region
    $region9: #{downsample_pallas.1} parent=5 // pred_check
      _
    $region10: #{downsample_pallas.1} parent=5 // pred_check_branch
      %132 = sbr.rel (%p129) target = $region12
    $region11: #{downsample_pallas.1} parent=5 // pred_region
      %s133 = ssub.s32 %s9, 1
      // Predicated region
      $region13: #{downsample_pallas.1} parent=11 // pred_check
        %p134 = pneg %p70
      $region14: #{downsample_pallas.1} parent=11 // pred_check_branch
        %136 = sbr.rel (%p134) target = $region16
      $region15: #{downsample_pallas.1} parent=11 // pred_region
        _
      $region16: #{downsample_pallas.1} parent=11 // pred_fallthru
        _
      // Predicated region
      $region17: #{downsample_pallas.1} parent=11 // pred_check
        %p137 = pneg %p91
      $region18: #{downsample_pallas.1} parent=11 // pred_check_branch
        %139 = sbr.rel (%p137) target = $region20
      $region19: #{downsample_pallas.1} parent=11 // pred_region
        _
      $region20: #{downsample_pallas.1} parent=11 // pred_fallthru
        _
    $region12: #{downsample_pallas.1} parent=5 // pred_fallthru
      _
    %p140 = scmp.lt.s32.totalorder %s9, 2
    // Predicated region
    $region21: #{downsample_pallas.1} parent=5 // pred_check
      %p141 = pneg %p140
    $region22: #{downsample_pallas.1} parent=5 // pred_check_branch
      %143 = sbr.rel (%p141) target = $region24
    $region23: #{downsample_pallas.1} parent=5 // pred_region
      // Predicated region
      $region25: #{downsample_pallas.1} parent=23 // pred_check
        %p144 = pneg %p43
      $region26: #{downsample_pallas.1} parent=23 // pred_check_branch
        %146 = sbr.rel (%p144) target = $region28
      $region27: #{downsample_pallas.1} parent=23 // pred_region
        %p147 = scmp.lt.s32.totalorder %s16, 1
        %s148 = scalar_select %p147, %s16, 1
        %p149 = scmp.lt.s32.totalorder %s17, 0
        %s150 = scalar_select %p149, %s17, 0
        %s151 = smul.addr %s148, 5
        %s152 = sadd.s32 %s150, %s151
        %s153 = smul.addr %s152, 8
        %s154 = scalar_lea.vmem %s0, %s153
      $region28: #{downsample_pallas.1} parent=23 // pred_fallthru
        _
    $region24: #{downsample_pallas.1} parent=5 // pred_fallthru
      _
    %p155 = scmp.le.s32.totalorder 1, %s9
    %p156 = scmp.lt.s32.totalorder %s9, 3
    %p157 = pnand %p155, %p156
    %p158 = pneg %p157
    // Predicated region
    $region29: #{downsample_pallas.1} parent=5 // pred_check
      _
    $region30: #{downsample_pallas.1} parent=5 // pred_check_branch
      %160 = sbr.rel (%p157) target = $region32
    $region31: #{downsample_pallas.1} parent=5 // pred_region
      %s161 = ssub.s32 %s9, 1
      %p162 = scmp.lt.s32.totalorder %s18, 1
      %s163 = scalar_select %p162, %s18, 1
      %p164 = scmp.lt.s32.totalorder %s19, 0
      %s165 = scalar_select %p164, %s19, 0
      %s166 = smul.addr %s163, 5
      %s167 = sadd.s32 %s165, %s166
      %s168 = smul.addr %s167, 8
      %s169 = scalar_lea.vmem %s0, %s168
      %p170 = pneg %p49
      %p171 = pneg %p46
      %p172 = pneg %p70
      %p173 = pneg %p67
      %p174 = pneg %p91
      %p175 = pneg %p88
      %p176 = pneg %p119
      %p177 = pneg %p116
      %p178 = scmp.lt.s32.totalorder %s18, 1
      %s179 = scalar_select %p178, %s18, 1
      %p180 = scmp.lt.s32.totalorder %s19, 0
      %s181 = scalar_select %p180, %s19, 0
      %s182 = sadd.s32 %s181, %s179
      %s183 = smul.addr %s182, 4
      %s184 = scalar_lea.vmem %s3, %s183
      %p185 = scmp.lt.s32.totalorder %s18, 1
      %s186 = scalar_select %p185, %s18, 1
      %p187 = scmp.lt.s32.totalorder %s19, 0
      %s188 = scalar_select %p187, %s19, 0
      %s189 = smul.addr %s186, 5
      %s190 = sadd.s32 %s188, %s189
      %s191 = smul.addr %s190, 8
      %s192 = scalar_lea.vmem %s0, %s191
      %p193 = scmp.lt.s32.totalorder %s18, 1
      %s194 = scalar_select %p193, %s18, 1
      %p195 = scmp.lt.s32.totalorder %s19, 0
      %s196 = scalar_select %p195, %s19, 0
      %s197 = sadd.s32 %s196, %s194
      %s198 = smul.addr %s197, 4
      %s199 = scalar_lea.vmem %s3, %s198
      %v200 = vld [vmem:[%s1] sm:$0xf]
      %v201 = vld [vmem:[%s192] sm:$0xff]
      %v202 = vld [vmem:[%s192 + $0x8] sm:$0xff]
      %v203 = vld [vmem:[%s192 + $0x10] sm:$0xff]
      %v204 = vld [vmem:[%s192 + $0x18] sm:$0xff]
      %v205 = vld [vmem:[%s192 + $0x20] sm:$0xf]
      %v206 = vld [vmem:[%s2] sm:$0xf]
      %208 = vset.pattern.permute.xlu0 0
      %209 = vperm.xlu0 %208, %v206
      %v210 = vpop.permute.xlu0 %209
      %vm212 = vcmask 293888
      %v214 = vsel %vm212, %v200, 0
      %vm216 = vcmask 1043456
      %v218 = vsel %vm216, %v205, 0
      %220 = vmatprep.subr.mxu0 0.0
      %221 = vmatpush1.msra.mxu0 %v201
      %222 = vmatprep.subr.mxu0 0.0
      %223 = vmatpush1.msra.mxu0 %v202
      %224 = vmatprep.subr.mxu0 0.0
      %225 = vmatpush1.msra.mxu0 %v203
      %226 = vmatprep.subr.mxu0 0.0
      %227 = vmatpush1.msra.mxu0 %v204
      %228 = vmatprep.subr.mxu0 0.0
      %229 = vmatpush1.msra.mxu0 %v218
      %230 = vmatprep.subr.mxu0 0.0
      %231 = vmatpush1.msra.mxu0 0.0
      %232 = vmatprep.subr.mxu0 0.0
      %233 = vmatpush1.msra.mxu0 0.0
      %234 = vmatprep.subr.mxu0 0.0
      %235 = vmatpush1.msra.mxu0 0.0
      %236 = vmatprep.subr.mxu0 0.0
      %237 = vmatpush1.msra.mxu0 0.0
      %238 = vmatprep.subr.mxu0 0.0
      %239 = vmatpush1.msra.mxu0 0.0
      %240 = vmatprep.subr.mxu0 0.0
      %241 = vmatpush1.msra.mxu0 0.0
      %242 = vmatprep.subr.mxu0 0.0
      %243 = vmatpush1.msra.mxu0 0.0
      %244 = vmatprep.subr.mxu0 0.0
      %245 = vmatpush1.msra.mxu0 0.0
      %246 = vmatprep.subr.mxu0 0.0
      %247 = vmatpush1.msra.mxu0 0.0
      %248 = vmatprep.subr.mxu0 0.0
      %249 = vmatpush1.msra.mxu0 0.0
      %250 = vmatprep.subr.mxu0 0.0
      %251 = vmatpush1.msra.mxu0 0.0
      %252 = vmatprep.subr.mxu0 0.0
      %253 = vmatpush1.msra.mxu0 0.0
      %254 = vmatprep.subr.mxu0 0.0
      %255 = vmatpush1.msra.mxu0 0.0
      %256 = vmatprep.subr.mxu0 0.0
      %257 = vmatpush1.msra.mxu0 0.0
      %258 = vmatprep.subr.mxu0 0.0
      %259 = vmatpush1.msra.mxu0 0.0
      %260 = vmatprep.subr.mxu0 0.0
      %261 = vmatpush1.msra.mxu0 0.0
      %262 = vmatprep.subr.mxu0 0.0
      %263 = vmatpush1.msra.mxu0 0.0
      %264 = vmatprep.subr.mxu0 0.0
      %265 = vmatpush1.msra.mxu0 0.0
      %266 = vmatprep.subr.mxu0 0.0
      %267 = vmatpush1.msra.mxu0 0.0
      %268 = vmatprep.subr.mxu0 0.0
      %269 = vmatpush1.msra.mxu0 0.0
      %270 = vmatprep.subr.mxu0 0.0
      %271 = vmatpush1.msra.mxu0 0.0
      %272 = vmatprep.subr.mxu0 0.0
      %273 = vmatpush1.msra.mxu0 0.0
      %274 = vmatprep.subr.mxu0 0.0
      %275 = vmatpush1.msra.mxu0 0.0
      %276 = vmatprep.subr.mxu0 0.0
      %277 = vmatpush1.msra.mxu0 0.0
      %278 = vmatprep.subr.mxu0 0.0
      %279 = vmatpush1.msra.mxu0 0.0
      %280 = vmatprep.subr.mxu0 0.0
      %281 = vmatpush1.msra.mxu0 0.0
      %282 = vmatprep.subr.mxu0 0.0
      %283 = vmatpush1.msra.mxu0 0.0
      %284 = vmatprep.mubr.f32.mxu0 0.0
      %285 = vmatmul.mubr.f32.gmra.mrb[0].mxu0 %v214
      %v286 = vpop.f32.mrb[0].mxu0
      %v287 = vadd.f32 %v210, %v286
      %v288 = vpop.f32.mrb[0].mxu0
      %289 = vdwg.mxu0
      %vm290 = vcmask 519168
      %291 = vst.msk [vmem:[%s199] sm:$0xf] %vm290, %v287
      %p292 = scmp.lt.s32.totalorder %s18, 1
      %s293 = scalar_select %p292, %s18, 1
      %p294 = scmp.lt.s32.totalorder %s19, 0
      %s295 = scalar_select %p294, %s19, 0
      %s296 = sadd.s32 %s295, %s293
      %s297 = smul.addr %s296, 4
      %s298 = scalar_lea.vmem %s3, %s297
      // Predicated region
      $region33: #{downsample_pallas.1} parent=31 // pred_check
        %p299 = pneg %p116
      $region34: #{downsample_pallas.1} parent=31 // pred_check_branch
        %301 = sbr.rel (%p299) target = $region36
      $region35: #{downsample_pallas.1} parent=31 // pred_region
        _
      $region36: #{downsample_pallas.1} parent=31 // pred_fallthru
        _
    $region32: #{downsample_pallas.1} parent=5 // pred_fallthru
      _
    %p302 = scmp.le.s32.totalorder 2, %s9
    // Predicated region
    $region37: #{downsample_pallas.1} parent=5 // pred_check
      %p303 = pneg %p302
    $region38: #{downsample_pallas.1} parent=5 // pred_check_branch
      %305 = sbr.rel (%p303) target = $region40
    $region39: #{downsample_pallas.1} parent=5 // pred_region
      %s306 = ssub.s32 %s9, 2
      // Predicated region
      $region41: #{downsample_pallas.1} parent=39 // pred_check
        %p307 = pneg %p122
      $region42: #{downsample_pallas.1} parent=39 // pred_check_branch
        %309 = sbr.rel (%p307) target = $region44
      $region43: #{downsample_pallas.1} parent=39 // pred_region
        %p310 = scmp.lt.s32.totalorder %s20, 1
        %s311 = scalar_select %p310, %s20, 1
        %p312 = scmp.lt.s32.totalorder %s21, 0
        %s313 = scalar_select %p312, %s21, 0
        %s314 = sadd.s32 %s313, %s311
        %s315 = smul.addr %s314, 4
        %s316 = scalar_lea.vmem %s3, %s315
      $region44: #{downsample_pallas.1} parent=39 // pred_fallthru
        _
    $region40: #{downsample_pallas.1} parent=5 // pred_fallthru
      _
  $region6: #{downsample_pallas.1} parent=0 // loop_footer
    %s13 = sadd.s32 1, %s9
  $region7: #{downsample_pallas.1} parent=0 // loop_footer_branch
    %8 = sbr.rel target = $region3
  $region8: #{downsample_pallas.1} parent=0 // loop_exit
    _

</llo_original>
